<compile_context>
chip_gen: v6e
topology: v6e:2x2x1
jax: 0.10.0
libtpu: 0.0.40
codegen_flags: <defaults>
</compile_context>

<pallas_src>
import functools

import jax
import jax.numpy as jnp
from jax.experimental import pallas as pl
from jax.experimental.pallas import tpu as pltpu

NUM_GUESTS = 24
NUM_SEATS = 24
HIDDEN = NUM_GUESTS * NUM_GUESTS  # 576


def _fused_kernel(x_ref, w_ref, b_ref, o_ref):
    # Single small MXU matmul on the fused (24 x 24) weight + broadcast bias.
    o_ref[...] = (
        jnp.dot(x_ref[...], w_ref[...], preferred_element_type=jnp.float32)
        + b_ref[...]
    ).astype(o_ref.dtype)


def fuse_params(w1, b1, w2, b2):
    """One-time algebraic fusion of the two bias-linears (no nonlinearity):
       (x @ w1 + b1) @ w2 + b2  ==  x @ (w1 @ w2) + (b1 @ w2 + b2).
    Done once at init; precision=HIGHEST since it is off the hot path."""
    hi = jax.lax.Precision.HIGHEST
    w_fused = jnp.dot(w1, w2, precision=hi,
                      preferred_element_type=jnp.float32)              # (24, 24)
    b_fused = jnp.dot(b1, w2, precision=hi,
                      preferred_element_type=jnp.float32) + b2         # (1, 24)
    return w_fused, b_fused


@functools.partial(jax.jit, static_argnames=("block_b",))
def seating_model_forward(x, w_fused, b_fused, *, block_b=2048):
    """x: (B, NUM_GUESTS) f32 -> (B, NUM_SEATS) f32.  Same math as fc2(fc1(x))."""
    B = x.shape[0]

    # Batch tiling: big tiles amortize per-grid-step overhead; last block may
    # be ragged (Pallas masks out-of-bounds rows), so no pad / slice ops.
    # block_b is a multiple of 8 sublanes; when B <= block_b the single block
    # equals the full array dims (always a legal block shape).
    tb = block_b if B > block_b else B
    grid = (pl.cdiv(B, tb),)

    cost = pl.CostEstimate(
        flops=2 * B * NUM_GUESTS * NUM_SEATS,
        transcendentals=0,
        bytes_accessed=4 * (B * NUM_GUESTS + NUM_GUESTS * NUM_SEATS
                            + NUM_SEATS + B * NUM_SEATS),
    )

    return pl.pallas_call(
        _fused_kernel,
        out_shape=jax.ShapeDtypeStruct((B, NUM_SEATS), jnp.float32),
        grid=grid,
        in_specs=[
            pl.BlockSpec((tb, NUM_GUESTS), lambda i: (i, 0)),      # x tile (pipelined)
            pl.BlockSpec((NUM_GUESTS, NUM_SEATS), lambda i: (0, 0)),  # fused W (resident)
            pl.BlockSpec((1, NUM_SEATS), lambda i: (0, 0)),           # fused b (resident)
        ],
        out_specs=pl.BlockSpec((tb, NUM_SEATS), lambda i: (i, 0)),
        compiler_params=pltpu.CompilerParams(
            dimension_semantics=("parallel",),
        ),
        cost_estimate=cost,
    )(x, w_fused, b_fused)


def init_params(key):
    """Deterministic PyTorch-style (uniform +/- 1/sqrt(fan_in)) initialization."""
    k1, k2, k3, k4 = jax.random.split(key, 4)
    bound1 = 1.0 / jnp.sqrt(jnp.float32(NUM_GUESTS))
    bound2 = 1.0 / jnp.sqrt(jnp.float32(HIDDEN))
    # Stored transposed: (in_features, out_features)
    w1 = jax.random.uniform(k1, (NUM_GUESTS, HIDDEN), jnp.float32, -bound1, bound1)
    b1 = jax.random.uniform(k2, (1, HIDDEN), jnp.float32, -bound1, bound1)
    w2 = jax.random.uniform(k3, (HIDDEN, NUM_SEATS), jnp.float32, -bound2, bound2)
    b2 = jax.random.uniform(k4, (1, NUM_SEATS), jnp.float32, -bound2, bound2)
    return w1, b1, w2, b2


if __name__ == "__main__":
    key = jax.random.PRNGKey(0)
    kx, kp = jax.random.split(key)

    batch = 2
    x = jax.random.normal(kx, (batch, NUM_GUESTS), jnp.float32)
    w1, b1, w2, b2 = init_params(kp)

    # One-time fusion (init-time), then the kernel is the entire forward pass.
    w_fused, b_fused = fuse_params(w1, b1, w2, b2)

    out = seating_model_forward(x, w_fused, b_fused)
    out = jax.block_until_ready(out)

    # Reference check: original two-layer forward in plain JAX (f32, HIGHEST).
    hi = jax.lax.Precision.HIGHEST
    ref = jnp.dot(jnp.dot(x, w1, precision=hi) + b1, w2, precision=hi) + b2
    assert out.shape == (batch, NUM_SEATS)
    assert jnp.allclose(out, ref, atol=1e-4, rtol=1e-4)

    print("KERNEL_OK")
</pallas_src>

<mosaic_0001>
module attributes {stable_mosaic.version = 11 : i64} {
  func.func @_fused_kernel(%arg0: i32, %arg1: memref<2x24xf32, #tpu.memory_space<vmem>>, %arg2: memref<24x24xf32, #tpu.memory_space<vmem>>, %arg3: memref<1x24xf32, #tpu.memory_space<vmem>>, %arg4: memref<2x24xf32, #tpu.memory_space<vmem>>) attributes {dimension_semantics = [#tpu.dimension_semantics<parallel>], iteration_bounds = array<i64: 1>, scalar_prefetch = 0 : i64, scratch_operands = 0 : i64, tpu.core_type = #tpu.core_type<tc>, window_params = [{transform_indices = @transform_0, window_bounds = array<i64: 2, 24>}, {pipeline_mode = #tpu.pipeline_mode<synchronous>, transform_indices = @transform_1, window_bounds = array<i64: 24, 24>}, {pipeline_mode = #tpu.pipeline_mode<synchronous>, transform_indices = @transform_2, window_bounds = array<i64: 1, 24>}, {transform_indices = @transform_3, window_bounds = array<i64: 2, 24>}]} {
    %c0 = arith.constant 0 : index
    %c0_0 = arith.constant 0 : index
    %0 = vector.load %arg1[%c0, %c0_0] : memref<2x24xf32, #tpu.memory_space<vmem>>, vector<2x24xf32>
    %c0_1 = arith.constant 0 : index
    %c0_2 = arith.constant 0 : index
    %1 = vector.load %arg2[%c0_1, %c0_2] : memref<24x24xf32, #tpu.memory_space<vmem>>, vector<24x24xf32>
    %cst = arith.constant dense<0.000000e+00> : vector<2x24xf32>
    %2 = tpu.matmul %0, %1, %cst {dimension_numbers = #tpu.dot_dimension_numbers<[1], [0], [0], [1], [0, 0, 1, 1], [], []>} : vector<2x24xf32>, vector<24x24xf32>, vector<2x24xf32> -> vector<2x24xf32>
    %c0_3 = arith.constant 0 : index
    %c0_4 = arith.constant 0 : index
    %3 = vector.load %arg3[%c0_3, %c0_4] : memref<1x24xf32, #tpu.memory_space<vmem>>, vector<1x24xf32>
    %4 = vector.broadcast %3 : vector<1x24xf32> to vector<2x24xf32>
    %5 = arith.addf %2, %4 : vector<2x24xf32>
    %c0_5 = arith.constant 0 : index
    %c0_6 = arith.constant 0 : index
    %6 = vector.load %arg4[%c0_5, %c0_6] : memref<2x24xf32, #tpu.memory_space<vmem>>, vector<2x24xf32>
    tpu.vector_store %arg4[%c0_5, %c0_6], %5 {strides = array<i32>} : memref<2x24xf32, #tpu.memory_space<vmem>>, vector<2x24xf32>,
    return
  }
  func.func @transform_0(%arg0: i32) -> (i32, i32) {
    %c0_i32 = arith.constant 0 : i32
    %c0_i32_0 = arith.constant 0 : i32
    return %arg0, %c0_i32 : i32, i32
  }
  func.func @transform_1(%arg0: i32) -> (i32, i32) {
    %c0_i32 = arith.constant 0 : i32
    %c0_i32_0 = arith.constant 0 : i32
    %c0_i32_1 = arith.constant 0 : i32
    return %c0_i32, %c0_i32_0 : i32, i32
  }
  func.func @transform_2(%arg0: i32) -> (i32, i32) {
    %c0_i32 = arith.constant 0 : i32
    %c0_i32_0 = arith.constant 0 : i32
    %c0_i32_1 = arith.constant 0 : i32
    return %c0_i32, %c0_i32_0 : i32, i32
  }
  func.func @transform_3(%arg0: i32) -> (i32, i32) {
    %c0_i32 = arith.constant 0 : i32
    %c0_i32_0 = arith.constant 0 : i32
    return %arg0, %c0_i32 : i32, i32
  }
}

</mosaic_0001>

<llo_original>
// kernel: seating_model_forward.1
$region0: #{seating_model_forward.1}
  #allocation0 [shape = 'u32[]', space=smem, size = 0x4, offset = 0x4, fixed_abs, tag = 'smem constant byte address 0x4 - core index']
  #allocation1 [shape = 'u32[144,128]{1,0:T(1,128)}', space=vmem, size = 0x12000, scoped, tag = 'internal scratch']
  %s0 = inlined_call_operand.hbm [shape: f32[2,24], index: 0, kind: input, shape index: {}]
  %s1 = inlined_call_operand.hbm [shape: f32[24,24], index: 1, kind: input, shape index: {}]
  %s2 = inlined_call_operand.vmem [shape: f32[1,24], index: 2, kind: input, shape index: {}]
  %s3 = inlined_call_operand.hbm [shape: f32[2,24], index: 3, kind: output, shape index: {}]
  %s4 = sld [smem:[#allocation0]]
  $region30: #{seating_model_forward.1} parent=0
    _
  %s6 = ssub.s32 1, %s4
  %s7 = scalar_select 0, %s6, %s4
  $region1: #{seating_model_forward.1} parent=0
    #allocation2 [shape = 'u8[1024]{0}', space=vmem, size = 0x400, scoped, tag = 'input window, operand 0, single buffered']
    #allocation3 [shape = 's32[1]{0}', space=sflag, size = 0x4, scoped, tag = 'scoped memory for seating_model_forward.1']
    #allocation4 [shape = 's32[1]{0}', space=sflag, size = 0x4, scoped, tag = 'scoped memory for seating_model_forward.1']
    #allocation5 [shape = 'u8[12288]{0}', space=vmem, size = 0x3000, scoped, tag = 'input window, operand 1, single buffered']
    #allocation6 [shape = 's32[1]{0}', space=sflag, size = 0x4, scoped, tag = 'scoped memory for seating_model_forward.1']
    #allocation7 [shape = 'u8[1024]{0}', space=vmem, size = 0x400, scoped, tag = 'output window, operand 0, single buffered']
    %8 = vsyncpa [#allocation3], 0
    %9 = vsyncpa [#allocation6], 0
    %10 = vsyncpa [#allocation4], 0
    // Predicated region
    $region2: #{seating_model_forward.1} parent=1 // pred_check
      _
    $region3: #{seating_model_forward.1} parent=1 // pred_check_branch
      %12 = sbr.rel (0) target = $region5
    $region4: #{seating_model_forward.1} parent=1 // pred_region
      %s14 = ssub.s32 32, 32
      %15 = vsyncadd [#allocation3], %s14
      %s17 = sshll.u32 [#allocation2], 4
      %s18 = int_to_ptr.vmem [resolvable:$true] %s17
      %20 = dma.hbm_to_vmem [thread:$0]  %s0, 32, %s18, [#allocation3]
    $region5: #{seating_model_forward.1} parent=1 // pred_fallthru
      _
    // Predicated region
    $region6: #{seating_model_forward.1} parent=1 // pred_check
      _
    $region7: #{seating_model_forward.1} parent=1 // pred_check_branch
      %22 = sbr.rel (0) target = $region9
    $region8: #{seating_model_forward.1} parent=1 // pred_region
      %s24 = ssub.s32 384, 384
      %25 = vsyncadd [#allocation6], %s24
      %s26 = sshll.u32 [#allocation5], 4
      %s27 = int_to_ptr.vmem [resolvable:$true] %s26
      %32 = dma.hbm_to_vmem [thread:$0]  %s1, 384, %s27, [#allocation6], 128, 128, 8
    $region9: #{seating_model_forward.1} parent=1 // pred_fallthru
      _
    // Predicated region
    $region10: #{seating_model_forward.1} parent=1 // pred_check
      _
    $region11: #{seating_model_forward.1} parent=1 // pred_check_branch
      %34 = sbr.rel (0) target = $region13
    $region12: #{seating_model_forward.1} parent=1 // pred_region
      _
    $region13: #{seating_model_forward.1} parent=1 // pred_fallthru
      _
    // Predicated region
    $region14: #{seating_model_forward.1} parent=1 // pred_check
      _
    $region15: #{seating_model_forward.1} parent=1 // pred_check_branch
      %36 = sbr.rel (0) target = $region17
    $region16: #{seating_model_forward.1} parent=1 // pred_region
      %37 = dma.done [#allocation3], 32
    $region17: #{seating_model_forward.1} parent=1 // pred_fallthru
      _
    // Predicated region
    $region18: #{seating_model_forward.1} parent=1 // pred_check
      _
    $region19: #{seating_model_forward.1} parent=1 // pred_check_branch
      %39 = sbr.rel (0) target = $region21
    $region20: #{seating_model_forward.1} parent=1 // pred_region
      %40 = dma.done [#allocation6], 384
    $region21: #{seating_model_forward.1} parent=1 // pred_fallthru
      _
    %v41 = vld [vmem:[#allocation2] sm:$0x3]
    %v42 = vld [vmem:[#allocation5] sm:$0xff]
    %v43 = vld [vmem:[#allocation5 + $0x8] sm:$0xff]
    %v44 = vld [vmem:[#allocation5 + $0x10] sm:$0xff]
    %v45 = vld [vmem:[%s2] sm:$0x1]
    %v47 = vlaneseq
    %v48 = vshrl.u32 %v47, 7
    %v49 = vsub.s32 0, %v48
    %v50 = vrot.slane %v45, %v49
    %vm52 = vcmask 195584
    %v54 = vsel %vm52, %v41, 0
    %56 = vmatprep.subr.mxu0 0.0
    %57 = vmatpush1.msra.mxu0 0.0
    %58 = vmatprep.subr.mxu0 0.0
    %59 = vmatpush1.msra.mxu0 0.0
    %60 = vmatprep.subr.mxu0 0.0
    %61 = vmatpush1.msra.mxu0 0.0
    %62 = vmatprep.subr.mxu0 0.0
    %63 = vmatpush1.msra.mxu0 0.0
    %64 = vmatprep.subr.mxu0 0.0
    %65 = vmatpush1.msra.mxu0 0.0
    %66 = vmatprep.subr.mxu0 0.0
    %67 = vmatpush1.msra.mxu0 0.0
    %68 = vmatprep.subr.mxu0 0.0
    %69 = vmatpush1.msra.mxu0 0.0
    %70 = vmatprep.subr.mxu0 0.0
    %71 = vmatpush1.msra.mxu0 0.0
    %72 = vmatprep.subr.mxu0 0.0
    %73 = vmatpush1.msra.mxu0 0.0
    %74 = vmatprep.subr.mxu0 0.0
    %75 = vmatpush1.msra.mxu0 0.0
    %76 = vmatprep.subr.mxu0 0.0
    %77 = vmatpush1.msra.mxu0 0.0
    %78 = vmatprep.subr.mxu0 0.0
    %79 = vmatpush1.msra.mxu0 0.0
    %80 = vmatprep.subr.mxu0 0.0
    %81 = vmatpush1.msra.mxu0 0.0
    %82 = vmatprep.subr.mxu0 0.0
    %83 = vmatpush1.msra.mxu0 %v44
    %84 = vmatprep.subr.mxu0 0.0
    %85 = vmatpush1.msra.mxu0 %v43
    %86 = vmatprep.subr.mxu0 0.0
    %87 = vmatpush1.msra.mxu0 %v42
    %88 = vmatprep.subr.mxu0 0.0
    %89 = vmatpush2.msra.mxu0 0.0
    %90 = vmatprep.subr.mxu0 0.0
    %91 = vmatpush2.msra.mxu0 0.0
    %92 = vmatprep.subr.mxu0 0.0
    %93 = vmatpush2.msra.mxu0 0.0
    %94 = vmatprep.subr.mxu0 0.0
    %95 = vmatpush2.msra.mxu0 0.0
    %96 = vmatprep.subr.mxu0 0.0
    %97 = vmatpush2.msra.mxu0 0.0
    %98 = vmatprep.subr.mxu0 0.0
    %99 = vmatpush2.msra.mxu0 0.0
    %100 = vmatprep.subr.mxu0 0.0
    %101 = vmatpush2.msra.mxu0 0.0
    %102 = vmatprep.subr.mxu0 0.0
    %103 = vmatpush2.msra.mxu0 0.0
    %104 = vmatprep.subr.mxu0 0.0
    %105 = vmatpush2.msra.mxu0 0.0
    %106 = vmatprep.subr.mxu0 0.0
    %107 = vmatpush2.msra.mxu0 0.0
    %108 = vmatprep.subr.mxu0 0.0
    %109 = vmatpush2.msra.mxu0 0.0
    %110 = vmatprep.subr.mxu0 0.0
    %111 = vmatpush2.msra.mxu0 0.0
    %112 = vmatprep.subr.mxu0 0.0
    %113 = vmatpush2.msra.mxu0 0.0
    %114 = vmatprep.subr.mxu0 0.0
    %115 = vmatpush2.msra.mxu0 0.0
    %116 = vmatprep.subr.mxu0 0.0
    %117 = vmatpush2.msra.mxu0 0.0
    %118 = vmatprep.subr.mxu0 0.0
    %119 = vmatpush2.msra.mxu0 0.0
    %120 = vmatprep.mubr.f32.mxu0 0.0
    %121 = vmatmul.mubr.f32.gmra.mxu0 %v54
    %v122 = vpop.f32.mrf.mxu0
    %v123 = vadd.f32 %v50, %v122
    %v124 = vpop.f32.mrf.mxu0
    %125 = vdwg.mxu0
    %vm126 = vcmask 189440
    %127 = vst.msk [vmem:[#allocation7] sm:$0x3] %vm126, %v123
    // Predicated region
    $region22: #{seating_model_forward.1} parent=1 // pred_check
      _
    $region23: #{seating_model_forward.1} parent=1 // pred_check_branch
      %129 = sbr.rel (0) target = $region25
    $region24: #{seating_model_forward.1} parent=1 // pred_region
      %s131 = ssub.s32 32, 32
      %132 = vsyncadd [#allocation4], %s131
      %s134 = sshll.u32 [#allocation7], 4
      %s135 = int_to_ptr.vmem [resolvable:$true] %s134
      %137 = dma.vmem_to_hbm [thread:$0]  %s135, 32, %s3, [#allocation4]
    $region25: #{seating_model_forward.1} parent=1 // pred_fallthru
      _
    // Predicated region
    $region26: #{seating_model_forward.1} parent=1 // pred_check
      _
    $region27: #{seating_model_forward.1} parent=1 // pred_check_branch
      %139 = sbr.rel (0) target = $region29
    $region28: #{seating_model_forward.1} parent=1 // pred_region
      %140 = dma.done [#allocation4], 32
    $region29: #{seating_model_forward.1} parent=1 // pred_fallthru
      _
    %141 = vsyncpa [#allocation3], 1
    %142 = vsyncpa [#allocation6], 1
    %143 = vsyncpa [#allocation4], 1

</llo_original>
